<compile_context>
chip_gen: v5e
topology: v5e:2x2
jax: 0.10.0
libtpu: 0.0.40
codegen_flags: <defaults>
</compile_context>

<pallas_src>
import math

import jax
import jax.numpy as jnp
import numpy as np
from jax.experimental import pallas as pl
from jax.experimental.pallas import tpu as pltpu


def _gather_kernel(idx_ref, row_ref, out_ref):
    """Copy the DMA-selected parameter row into the output slot.

    idx_ref: (B,)      int32   SMEM  (scalar prefetch; consumed by index_maps)
    row_ref: (1, 1, W) float32 VMEM  (row `indices[i]` of the packed table)
    out_ref: (1, 1, W) float32 VMEM  (row `i` of the packed output)
    """
    del idx_ref  # only used by the index_maps
    out_ref[...] = row_ref[...]


def cam_params_forward(phi, t, f, indices):
    """JAX/Pallas equivalent of CamParams.forward.

    phi:     (N, P) float32   rotation parameter per image (P=4 for quaternion)
    t:       (N, 3) float32   translation per image
    f:       (2,)   float32   focal params
    indices: (B,)   int32
    returns: (phi[indices] (B,P), t[indices] (B,3), fx scalar, fy scalar)
    """
    N, P = phi.shape
    T = t.shape[1]
    B = indices.shape[0]

    # PyTorch-style negative indexing + clamp (avoid OOB DMA faults).
    idx = indices.astype(jnp.int32)
    idx = jnp.where(idx < 0, idx + N, idx)
    idx = jnp.clip(idx, 0, N - 1)

    # Pack phi | t into one lane-dense row table; pad row width to even (8 for
    # the quaternion repr) so the packed row stays 32-bit-word friendly.
    row_w = ((P + T + 1) // 2) * 2
    pad = row_w - (P + T)
    table = jnp.concatenate(
        [phi.astype(jnp.float32),
         jnp.pad(t.astype(jnp.float32), ((0, 0), (0, pad)))],
        axis=1,
    )
    # View as (N, 1, row_w): block last-two dims == full array dims.
    table3 = table.reshape(N, 1, row_w)

    out = pl.pallas_call(
        _gather_kernel,
        out_shape=jax.ShapeDtypeStruct((B, 1, row_w), jnp.float32),
        grid_spec=pltpu.PrefetchScalarGridSpec(
            num_scalar_prefetch=1,
            grid=(B,),
            in_specs=[
                # data-dependent gather: DMA only row indices[i] per step
                pl.BlockSpec((1, 1, row_w), lambda i, idx_ref: (idx_ref[i], 0, 0)),
            ],
            out_specs=pl.BlockSpec((1, 1, row_w), lambda i, idx_ref: (i, 0, 0)),
        ),
        compiler_params=pltpu.CompilerParams(
            dimension_semantics=("parallel",),  # v7x: split batch over 2 TCs
        ),
    )(idx, table3)

    packed = out.reshape(B, row_w)
    phi_sel = packed[:, :P]
    t_sel = packed[:, P:P + T]

    fx, fy = f[0], f[1]  # unpack of self.f (pure glue)
    return phi_sel, t_sel, fx, fy


def make_cam_params(num_imgs, so3_repr="quaternion", intr_repr="square",
                    initial_fov=53.0, key=None):
    """Deterministic parameter init mirroring CamParams.from_config shapes."""
    if so3_repr == "quaternion":
        base = jnp.array([1.0, 0.0, 0.0, 0.0], dtype=jnp.float32)
    elif so3_repr == "axis-angle":
        base = jnp.array([0.0, 0.0, 0.0], dtype=jnp.float32)
    else:  # rotation6D
        base = jnp.array([1.0, 0.0, 0.0, 0.0, 1.0, 0.0], dtype=jnp.float32)
    phi = jnp.tile(base[None, :], (num_imgs, 1))

    t = jnp.zeros((num_imgs, 3), dtype=jnp.float32)
    t = t.at[:, 2].set(jnp.linspace(-1.0, 1.0, num_imgs) * 0.013 * num_imgs * 0.5)

    s = 0.5 / math.tan(0.5 * initial_fov * math.pi / 180.0)
    f = jnp.array([s, s], dtype=jnp.float32)
    if intr_repr == "square":
        f = jnp.sqrt(f)

    # small deterministic perturbation so gathered rows are distinguishable
    if key is not None:
        k1, k2 = jax.random.split(key)
        phi = phi + 0.01 * jax.random.normal(k1, phi.shape, dtype=jnp.float32)
        t = t + 0.01 * jax.random.normal(k2, t.shape, dtype=jnp.float32)
    return phi, t, f


if __name__ == "__main__":
    key = jax.random.PRNGKey(0)
    num_imgs = 16           # number of posed images (rows in phi / t)
    batch = 8               # number of indices queried per forward

    k_param, k_idx = jax.random.split(key)
    phi, t, f = make_cam_params(num_imgs, so3_repr="quaternion", key=k_param)
    indices = jax.random.randint(k_idx, (batch,), 0, num_imgs, dtype=jnp.int32)

    phi_sel, t_sel, fx, fy = cam_params_forward(phi, t, f, indices)
    jax.block_until_ready((phi_sel, t_sel, fx, fy))

    # reference check against plain JAX gather
    phi_ref = phi[indices]
    t_ref = t[indices]
    np.testing.assert_allclose(np.asarray(phi_sel), np.asarray(phi_ref), atol=1e-6)
    np.testing.assert_allclose(np.asarray(t_sel), np.asarray(t_ref), atol=1e-6)
    np.testing.assert_allclose(np.asarray(fx), np.asarray(f[0]), atol=1e-6)
    np.testing.assert_allclose(np.asarray(fy), np.asarray(f[1]), atol=1e-6)
    assert phi_sel.shape == (batch, 4) and t_sel.shape == (batch, 3)
    assert fx.shape == () and fy.shape == ()

    print("KERNEL_OK")
</pallas_src>

<mosaic_0001>
module attributes {stable_mosaic.version = 11 : i64} {
  func.func @_gather_kernel(%arg0: i32, %arg1: memref<8xi32, #tpu.memory_space<smem>>, %arg2: memref<1x1x8xf32, #tpu.memory_space<vmem>>, %arg3: memref<1x1x8xf32, #tpu.memory_space<vmem>>) attributes {dimension_semantics = [#tpu.dimension_semantics<parallel>], iteration_bounds = array<i64: 8>, scalar_prefetch = 1 : i64, scratch_operands = 0 : i64, tpu.core_type = #tpu.core_type<tc>, window_params = [{transform_indices = @transform_0, window_bounds = array<i64: 1, 1, 8>}, {transform_indices = @transform_1, window_bounds = array<i64: 1, 1, 8>}]} {
    %c0 = arith.constant 0 : index
    %c0_0 = arith.constant 0 : index
    %c0_1 = arith.constant 0 : index
    %0 = vector.load %arg2[%c0, %c0_0, %c0_1] : memref<1x1x8xf32, #tpu.memory_space<vmem>>, vector<1x1x8xf32>
    %c0_2 = arith.constant 0 : index
    %c0_3 = arith.constant 0 : index
    %c0_4 = arith.constant 0 : index
    %1 = vector.load %arg3[%c0_2, %c0_3, %c0_4] : memref<1x1x8xf32, #tpu.memory_space<vmem>>, vector<1x1x8xf32>
    tpu.vector_store %arg3[%c0_2, %c0_3, %c0_4], %0 {strides = array<i32>} : memref<1x1x8xf32, #tpu.memory_space<vmem>>, vector<1x1x8xf32>,
    return
  }
  func.func @transform_0(%arg0: i32, %arg1: memref<8xi32, #tpu.memory_space<smem>>) -> (i32, i32, i32) {
    %0 = arith.index_cast %arg0 : i32 to index
    %1 = memref.load %arg1[%0] : memref<8xi32, #tpu.memory_space<smem>>
    %c0_i32 = arith.constant 0 : i32
    %c0_i32_0 = arith.constant 0 : i32
    %c0_i32_1 = arith.constant 0 : i32
    return %1, %c0_i32, %c0_i32_0 : i32, i32, i32
  }
  func.func @transform_1(%arg0: i32, %arg1: memref<8xi32, #tpu.memory_space<smem>>) -> (i32, i32, i32) {
    %c0_i32 = arith.constant 0 : i32
    %c0_i32_0 = arith.constant 0 : i32
    %c0_i32_1 = arith.constant 0 : i32
    return %arg0, %c0_i32, %c0_i32_0 : i32, i32, i32
  }
}

</mosaic_0001>

<llo_original>
// kernel: tpu_custom_call.1
$region0: #{tpu_custom_call.1}
  #allocation0 [shape = 'u32[]', space=smem, size = 0x4, offset = 0x4, fixed_abs, tag = 'smem constant byte address 0x4 - core index']
  #allocation1 [shape = 'u32[72,128]{1,0:T(1,128)}', space=vmem, size = 0x9000, scoped, tag = 'internal scratch']
  #allocation2 [shape = 's32[1]{0}', space=sflag, size = 0x4, scoped, tag = 'scoped memory for tpu_custom_call.1']
  #allocation3 [shape = 'u8[512]{0}', space=smem, size = 0x200, scoped, tag = 'prefetched SMEM operand 0']
  %s0 = inlined_call_operand.vmem [shape: s32[8], index: 0, kind: input, shape index: {}]
  %s1 = inlined_call_operand.vmem [shape: f32[16,1,8], index: 1, kind: input, shape index: {}]
  %s2 = inlined_call_operand.hbm [shape: f32[8,1,8], index: 2, kind: output, shape index: {}]
  %s3 = sld [smem:[#allocation0]]
  $region37: #{tpu_custom_call.1} parent=0
    _
  %s5 = ssub.s32 1, %s3
  %s6 = scalar_select 0, %s5, %s3
  %s8 = sshll.u32 %s0, 4
  %s9 = int_to_ptr.vmem [resolvable:$true] %s8
  %11 = dma.vmem_to_smem %s9, 16, [#allocation3], [#allocation2]
  %13 = dma.done [#allocation2], 16
  %14 = sfence
  $region1: #{tpu_custom_call.1} parent=0
    #allocation4 [shape = 'u8[1024]{0}', space=vmem, size = 0x400, scoped, tag = 'output window, operand 0']
    #allocation5 [shape = 's32[2]{0}', space=sflag, size = 0x8, scoped, tag = 'scoped memory for tpu_custom_call.1']
    %15 = vsyncpa [#allocation5], 0
    %s16 = scalar_lea.sflag [#allocation5], 1
    %17 = vsyncpa %s16, 0
    loop: start=0, step=1, limit=10
    $region2: #{tpu_custom_call.1} parent=1 // loop_pre_header
      _
    $region3: #{tpu_custom_call.1} parent=1 // loop_header
      %s19 = sphi 0, %s23
      %p20 = scmp.ge.s32.totalorder %s19, 10
      %s31 = sphi 0, %s33
      %s34 = sphi 0, %s31
      %s35 = sphi 0, %s34
      %s51 = sphi 0, %s35
      %s57 = sphi 0, %s59
      %s60 = sphi 0, %s57
      %s61 = sphi 0, %s60
      %s77 = sphi 0, %s61
    $region4: #{tpu_custom_call.1} parent=1 // loop_header_branch
      %22 = sbr.rel (%p20) target = $region8
    $region5: #{tpu_custom_call.1} parent=1 // loop_body
      %s24 = ssub.s32 %s19, 1
      %s25 = ssub.s32 %s19, 2
      %s26 = sadd.s32 %s19, 1
      %s27 = sld [smem:[#allocation3 + %s19]]
      %s28 = sld [smem:[#allocation3 + %s26]]
      %s29 = ssub.s32 %s27, %s28
      %p30 = scmp.eq.s32.totalorder %s29, 0
      %s32 = sadd.s32 %s31, 1
      %s33 = scalar_select %p30, %s31, %s32
      %p36 = pneg %p30
      %p37 = scmp.eq.s32.totalorder %s19, 7
      %p38 = por %p36, %p37
      %p39 = scmp.ne.s32.totalorder %s31, %s34
      %p40 = scmp.eq.s32.totalorder %s19, 0
      %p41 = por %p39, %p40
      %p42 = scmp.ne.s32.totalorder %s31, %s34
      %p43 = scmp.eq.s32.totalorder %s24, 7
      %p44 = por %p42, %p43
      %p45 = scmp.ne.s32.totalorder %s34, %s35
      %p46 = scmp.eq.s32.totalorder %s24, 0
      %p47 = por %p45, %p46
      %p48 = scmp.ne.s32.totalorder %s34, %s35
      %p49 = scmp.eq.s32.totalorder %s25, 7
      %p50 = por %p48, %p49
      %p52 = scmp.ne.s32.totalorder %s35, %s51
      %p53 = scmp.eq.s32.totalorder %s25, 0
      %p54 = por %p52, %p53
      %s55 = ssub.s32 %s19, %s26
      %p56 = scmp.eq.s32.totalorder %s55, 0
      %s58 = sadd.s32 %s57, 1
      %s59 = scalar_select %p56, %s57, %s58
      %p62 = pneg %p56
      %p63 = scmp.eq.s32.totalorder %s19, 7
      %p64 = por %p62, %p63
      %p65 = scmp.ne.s32.totalorder %s57, %s60
      %p66 = scmp.eq.s32.totalorder %s19, 0
      %p67 = por %p65, %p66
      %p68 = scmp.ne.s32.totalorder %s57, %s60
      %p69 = scmp.eq.s32.totalorder %s24, 7
      %p70 = por %p68, %p69
      %p71 = scmp.ne.s32.totalorder %s60, %s61
      %p72 = scmp.eq.s32.totalorder %s24, 0
      %p73 = por %p71, %p72
      %p74 = scmp.ne.s32.totalorder %s60, %s61
      %p75 = scmp.eq.s32.totalorder %s25, 7
      %p76 = por %p74, %p75
      %p78 = scmp.ne.s32.totalorder %s61, %s77
      %p79 = scmp.eq.s32.totalorder %s25, 0
      %p80 = por %p78, %p79
      %p81 = scmp.le.s32.totalorder 1, %s19
      %p82 = scmp.lt.s32.totalorder %s19, 9
      %p83 = pnand %p81, %p82
      %p84 = pneg %p83
      // Predicated region
      $region9: #{tpu_custom_call.1} parent=5 // pred_check
        _
      $region10: #{tpu_custom_call.1} parent=5 // pred_check_branch
        %86 = sbr.rel (%p83) target = $region12
      $region11: #{tpu_custom_call.1} parent=5 // pred_region
        %s87 = ssub.s32 %s19, 1
      $region12: #{tpu_custom_call.1} parent=5 // pred_fallthru
        _
      %p88 = scmp.lt.s32.totalorder %s19, 8
      // Predicated region
      $region13: #{tpu_custom_call.1} parent=5 // pred_check
        %p89 = pneg %p88
      $region14: #{tpu_custom_call.1} parent=5 // pred_check_branch
        %91 = sbr.rel (%p89) target = $region16
      $region15: #{tpu_custom_call.1} parent=5 // pred_region
        // Predicated region
        $region17: #{tpu_custom_call.1} parent=15 // pred_check
          %p92 = pneg %p41
        $region18: #{tpu_custom_call.1} parent=15 // pred_check_branch
          %94 = sbr.rel (%p92) target = $region20
        $region19: #{tpu_custom_call.1} parent=15 // pred_region
          %s95 = sld [smem:[#allocation3 + %s19]]
          %p96 = scmp.lt.s32.totalorder %s95, 15
          %s97 = scalar_select %p96, %s95, 15
          %s98 = scalar_lea.vmem %s1, %s97
          %s99 = sld [smem:[#allocation3 + %s19]]
        $region20: #{tpu_custom_call.1} parent=15 // pred_fallthru
          _
      $region16: #{tpu_custom_call.1} parent=5 // pred_fallthru
        _
      %p100 = scmp.le.s32.totalorder 1, %s19
      %p101 = scmp.lt.s32.totalorder %s19, 9
      %p102 = pnand %p100, %p101
      %p103 = pneg %p102
      // Predicated region
      $region21: #{tpu_custom_call.1} parent=5 // pred_check
        _
      $region22: #{tpu_custom_call.1} parent=5 // pred_check_branch
        %105 = sbr.rel (%p102) target = $region24
      $region23: #{tpu_custom_call.1} parent=5 // pred_region
        %s106 = ssub.s32 %s19, 1
        %s107 = sld [smem:[#allocation3 + %s24]]
        %p108 = scmp.lt.s32.totalorder %s107, 15
        %s109 = scalar_select %p108, %s107, 15
        %s110 = scalar_lea.vmem %s1, %s109
        %p111 = pneg %p47
        %p112 = pneg %p44
        %p113 = pneg %p73
        %p114 = pneg %p70
        %s115 = sand.u32 %s60, 1
        %s116 = scalar_lea.sflag [#allocation5], %s115
        %s117 = sand.u32 %s60, 1
        %s118 = scalar_lea.vmem [#allocation4], %s117
        %s119 = sld [smem:[#allocation3 + %s24]]
        %p120 = scmp.lt.s32.totalorder %s119, 15
        %s121 = scalar_select %p120, %s119, 15
        %s122 = scalar_lea.vmem %s1, %s121
        %s123 = sld [smem:[#allocation3 + %s24]]
        %v124 = vld [vmem:[%s122] sm:$0x1]
        %vm125 = vcmask 57344
        %126 = vst.msk [vmem:[%s118] sm:$0x1] %vm125, %v124
        %s127 = sand.u32 %s60, 1
        %s128 = scalar_lea.sflag [#allocation5], %s127
        %s129 = sand.u32 %s60, 1
        %s130 = scalar_lea.vmem [#allocation4], %s129
        // Predicated region
        $region25: #{tpu_custom_call.1} parent=23 // pred_check
          %p131 = pneg %p70
        $region26: #{tpu_custom_call.1} parent=23 // pred_check_branch
          %133 = sbr.rel (%p131) target = $region28
        $region27: #{tpu_custom_call.1} parent=23 // pred_region
          %135 = vsyncadd %s128, 0
          %s136 = scalar_lea.hbm %s2, %s24
          %s138 = sshll.u32 %s130, 4
          %s139 = int_to_ptr.vmem [resolvable:$true] %s138
          %s140 = sshll.u32 %s136, 4
          %s141 = int_to_ptr.hbm [resolvable:$true] %s140
          %143 = dma.vmem_to_hbm [thread:$0]  %s139, 16, %s141, %s128
        $region28: #{tpu_custom_call.1} parent=23 // pred_fallthru
          _
      $region24: #{tpu_custom_call.1} parent=5 // pred_fallthru
        _
      %p144 = scmp.le.s32.totalorder 2, %s19
      // Predicated region
      $region29: #{tpu_custom_call.1} parent=5 // pred_check
        %p145 = pneg %p144
      $region30: #{tpu_custom_call.1} parent=5 // pred_check_branch
        %147 = sbr.rel (%p145) target = $region32
      $region31: #{tpu_custom_call.1} parent=5 // pred_region
        %s148 = ssub.s32 %s19, 2
        // Predicated region
        $region33: #{tpu_custom_call.1} parent=31 // pred_check
          %p149 = pneg %p76
        $region34: #{tpu_custom_call.1} parent=31 // pred_check_branch
          %151 = sbr.rel (%p149) target = $region36
        $region35: #{tpu_custom_call.1} parent=31 // pred_region
          %s152 = sand.u32 %s61, 1
          %s153 = scalar_lea.sflag [#allocation5], %s152
          %s154 = sand.u32 %s61, 1
          %s155 = scalar_lea.vmem [#allocation4], %s154
          %157 = dma.done %s153, 16
        $region36: #{tpu_custom_call.1} parent=31 // pred_fallthru
          _
      $region32: #{tpu_custom_call.1} parent=5 // pred_fallthru
        _
    $region6: #{tpu_custom_call.1} parent=1 // loop_footer
      %s23 = sadd.s32 1, %s19
    $region7: #{tpu_custom_call.1} parent=1 // loop_footer_branch
      %18 = sbr.rel target = $region3
    $region8: #{tpu_custom_call.1} parent=1 // loop_exit
      _
    %158 = vsyncpa [#allocation5], 1
    %s159 = scalar_lea.sflag [#allocation5], 1
    %160 = vsyncpa %s159, 1

</llo_original>
